<compile_context>
chip_gen: v7x
topology: tpu7x:2x2x1
jax: 0.10.0
libtpu: 0.0.40
codegen_flags: <defaults>
</compile_context>

<pallas_src>
import functools

import jax
import jax.numpy as jnp
from jax import lax
from jax.experimental import pallas as pl
from jax.experimental.pallas import tpu as pltpu


def _critic_kernel(x_ref, w1_ref, b1_ref, w2_ref, b2_ref, w3_ref, b3_ref, out_ref):
    # x_ref:   (bm, D_in)  input dtype (cast to compute dtype in-kernel)
    # w1_ref:  (fc1, D_in), b1_ref: (fc1, 1)   -- PyTorch nn.Linear layout
    # w2_ref:  (fc2, fc1),  b2_ref: (fc2, 1)
    # w3_ref:  (1,   fc2),  b3_ref: (1, 1)
    # out_ref: (1, bm)  -- batch on lanes (lane-dense store)
    x = x_ref[...].astype(w1_ref.dtype)

    # (fc1, D_in) contracted with (bm, D_in) on D_in  ->  (fc1, bm)
    h1 = lax.dot_general(
        w1_ref[...], x, (((1,), (1,)), ((), ())),
        preferred_element_type=jnp.float32)
    h1 = jnp.maximum(h1 + b1_ref[...], 0.0).astype(w2_ref.dtype)   # f32 bias+ReLU (VPU)

    h2 = jnp.dot(w2_ref[...], h1, preferred_element_type=jnp.float32)
    h2 = jnp.maximum(h2 + b2_ref[...], 0.0).astype(w3_ref.dtype)

    v = jnp.dot(w3_ref[...], h2, preferred_element_type=jnp.float32) + b3_ref[...]
    out_ref[...] = v.astype(out_ref.dtype)                          # (1, bm)


def _round_up(n, m):
    return ((n + m - 1) // m) * m


@functools.partial(jax.jit, static_argnames=("compute_dtype",))
def critic_forward(state, w1, b1, w2, b2, w3, b3, compute_dtype=jnp.bfloat16):
    """Forward pass of the Critic MLP.

    state: (B, D_in) float32
    w1: (fc1, D_in), b1: (fc1,)     -- PyTorch nn.Linear native layout
    w2: (fc2, fc1),  b2: (fc2,)
    w3: (1,   fc2),  b3: (1,)
    Returns value of shape (B, 1) float32.
    """
    B, d_in = state.shape
    fc1 = w1.shape[0]
    fc2 = w2.shape[0]

    # Batch tile: full array when tiny (exact block, no partial tiles); otherwise
    # a multiple of 128, capped at 2048, sized so the grid has >= 2 steps
    # (keeps both v7x TensorCores busy) while amortizing per-step overhead.
    if B <= 128:
        block_m = B
    else:
        block_m = min(2048, max(128, _round_up(pl.cdiv(B, 2), 128)))
    grid = (pl.cdiv(B, block_m),)

    # Weights/biases: weights in compute dtype (bf16 default, MXU-native),
    # biases in f32 as (fan_out, 1) columns broadcast over lanes.
    w1c = w1.astype(compute_dtype)
    w2c = w2.astype(compute_dtype)
    w3c = w3.astype(compute_dtype)
    b1c = b1.astype(jnp.float32).reshape(fc1, 1)
    b2c = b2.astype(jnp.float32).reshape(fc2, 1)
    b3c = b3.astype(jnp.float32).reshape(1, 1)

    itemsize = jnp.dtype(compute_dtype).itemsize
    cost = pl.CostEstimate(
        flops=2 * B * (d_in * fc1 + fc1 * fc2 + fc2),
        transcendentals=0,
        bytes_accessed=(state.size * state.dtype.itemsize
                        + (w1c.size + w2c.size + w3c.size) * itemsize
                        + (fc1 + fc2 + 1) * 4
                        + B * 4),
    )

    out = pl.pallas_call(
        _critic_kernel,
        out_shape=jax.ShapeDtypeStruct((1, B), jnp.float32),
        grid_spec=pltpu.PrefetchScalarGridSpec(
            num_scalar_prefetch=0,
            grid=grid,
            in_specs=[
                pl.BlockSpec((block_m, d_in), lambda i: (i, 0)),   # x tile (batch on sublanes)
                pl.BlockSpec((fc1, d_in), lambda i: (0, 0)),       # W1 (VMEM-resident)
                pl.BlockSpec((fc1, 1), lambda i: (0, 0)),          # b1
                pl.BlockSpec((fc2, fc1), lambda i: (0, 0)),        # W2
                pl.BlockSpec((fc2, 1), lambda i: (0, 0)),          # b2
                pl.BlockSpec((1, fc2), lambda i: (0, 0)),          # W3
                pl.BlockSpec((1, 1), lambda i: (0, 0)),            # b3
            ],
            out_specs=pl.BlockSpec((1, block_m), lambda i: (0, i)),  # lane-dense output
        ),
        compiler_params=pltpu.CompilerParams(
            dimension_semantics=("parallel",),                     # megacore sharding on v7x
        ),
        cost_estimate=cost,
    )(state, w1c, b1c, w2c, b2c, w3c, b3c)

    return out.reshape(B, 1)


def init_linear_params(key, fan_in, fan_out):
    """Deterministic init matching nn.Linear's U(-1/sqrt(fan_in), 1/sqrt(fan_in)).

    Returns weight in PyTorch-native layout (fan_out, fan_in) and bias (fan_out,).
    """
    k_w, k_b = jax.random.split(key)
    bound = 1.0 / jnp.sqrt(float(fan_in))
    w = jax.random.uniform(k_w, (fan_out, fan_in), jnp.float32, -bound, bound)
    b = jax.random.uniform(k_b, (fan_out,), jnp.float32, -bound, bound)
    return w, b


def _ref_forward(state, w1, b1, w2, b2, w3, b3):
    h1 = jnp.maximum(state @ w1.T + b1, 0.0)
    h2 = jnp.maximum(h1 @ w2.T + b2, 0.0)
    return h2 @ w3.T + b3                                           # (B, 1)


if __name__ == "__main__":
    # Small shapes consistent with the module: input_dims=(8,), fc1=fc2=256.
    D_IN = 8
    FC1 = 256
    FC2 = 256

    root = jax.random.PRNGKey(0)
    k_x, k_x2, k1, k2, k3 = jax.random.split(root, 5)

    w1, b1 = init_linear_params(k1, D_IN, FC1)
    w2, b2 = init_linear_params(k2, FC1, FC2)
    w3, b3 = init_linear_params(k3, FC2, 1)

    # --- small batch (single full tile) ---
    B = 16
    state = jax.random.normal(k_x, (B, D_IN), jnp.float32)
    ref = _ref_forward(state, w1, b1, w2, b2, w3, b3)

    # f32 path: exact match to the reference.
    value = critic_forward(state, w1, b1, w2, b2, w3, b3, compute_dtype=jnp.float32)
    value = jax.block_until_ready(value)
    assert value.shape == (B, 1)
    assert jnp.allclose(value, ref, atol=1e-5, rtol=1e-5)

    # bf16 (default) path: MXU-native on all generations; looser tolerance.
    value_bf16 = critic_forward(state, w1, b1, w2, b2, w3, b3)
    value_bf16 = jax.block_until_ready(value_bf16)
    assert value_bf16.shape == (B, 1)
    assert jnp.allclose(value_bf16, ref, atol=5e-2, rtol=5e-2)

    # --- batch that exercises multi-step grid + masked partial last tile ---
    B2 = 300   # block_m=256, grid=2, last tile only partially valid
    state2 = jax.random.normal(k_x2, (B2, D_IN), jnp.float32)
    ref2 = _ref_forward(state2, w1, b1, w2, b2, w3, b3)
    value2 = critic_forward(state2, w1, b1, w2, b2, w3, b3, compute_dtype=jnp.float32)
    value2 = jax.block_until_ready(value2)
    assert value2.shape == (B2, 1)
    assert jnp.allclose(value2, ref2, atol=1e-5, rtol=1e-5)

    # TODO(synk): the Adam optimizer step and checkpoint save/load of the PyTorch
    # module are host-side training utilities, not part of the forward pass.
    print("KERNEL_OK")
</pallas_src>

<mosaic_0001>
module attributes {stable_mosaic.version = 11 : i64} {
  func.func @_critic_kernel(%arg0: i32, %arg1: memref<16x8xf32, #tpu.memory_space<vmem>>, %arg2: memref<256x8xf32, #tpu.memory_space<vmem>>, %arg3: memref<256x1xf32, #tpu.memory_space<vmem>>, %arg4: memref<256x256xf32, #tpu.memory_space<vmem>>, %arg5: memref<256x1xf32, #tpu.memory_space<vmem>>, %arg6: memref<1x256xf32, #tpu.memory_space<vmem>>, %arg7: memref<1x1xf32, #tpu.memory_space<vmem>>, %arg8: memref<1x16xf32, #tpu.memory_space<vmem>>) attributes {dimension_semantics = [#tpu.dimension_semantics<parallel>], iteration_bounds = array<i64: 1>, scalar_prefetch = 0 : i64, scratch_operands = 0 : i64, tpu.core_type = #tpu.core_type<tc>, window_params = [{transform_indices = @transform_0, window_bounds = array<i64: 16, 8>}, {pipeline_mode = #tpu.pipeline_mode<synchronous>, transform_indices = @transform_1, window_bounds = array<i64: 256, 8>}, {pipeline_mode = #tpu.pipeline_mode<synchronous>, transform_indices = @transform_2, window_bounds = array<i64: 256, 1>}, {pipeline_mode = #tpu.pipeline_mode<synchronous>, transform_indices = @transform_3, window_bounds = array<i64: 256, 256>}, {pipeline_mode = #tpu.pipeline_mode<synchronous>, transform_indices = @transform_4, window_bounds = array<i64: 256, 1>}, {pipeline_mode = #tpu.pipeline_mode<synchronous>, transform_indices = @transform_5, window_bounds = array<i64: 1, 256>}, {pipeline_mode = #tpu.pipeline_mode<synchronous>, transform_indices = @transform_6, window_bounds = array<i64: 1, 1>}, {transform_indices = @transform_7, window_bounds = array<i64: 1, 16>}]} {
    %c0 = arith.constant 0 : index
    %c0_0 = arith.constant 0 : index
    %0 = vector.load %arg1[%c0, %c0_0] : memref<16x8xf32, #tpu.memory_space<vmem>>, vector<16x8xf32>
    %c0_1 = arith.constant 0 : index
    %c0_2 = arith.constant 0 : index
    %1 = vector.load %arg2[%c0_1, %c0_2] : memref<256x8xf32, #tpu.memory_space<vmem>>, vector<256x8xf32>
    %cst = arith.constant dense<0.000000e+00> : vector<256x16xf32>
    %2 = tpu.matmul %1, %0, %cst {dimension_numbers = #tpu.dot_dimension_numbers<[1], [1], [0], [0], [0, 0, 1, 0], [], []>} : vector<256x8xf32>, vector<16x8xf32>, vector<256x16xf32> -> vector<256x16xf32>
    %c0_3 = arith.constant 0 : index
    %c0_4 = arith.constant 0 : index
    %3 = vector.load %arg3[%c0_3, %c0_4] : memref<256x1xf32, #tpu.memory_space<vmem>>, vector<256x1xf32>
    %4 = vector.broadcast %3 : vector<256x1xf32> to vector<256x16xf32>
    %5 = arith.addf %2, %4 : vector<256x16xf32>
    %cst_5 = arith.constant 0.000000e+00 : f32
    %6 = vector.broadcast %cst_5 : f32 to vector<256x16xf32>
    %7 = arith.maximumf %5, %6 : vector<256x16xf32>
    %c0_6 = arith.constant 0 : index
    %c0_7 = arith.constant 0 : index
    %8 = vector.load %arg4[%c0_6, %c0_7] : memref<256x256xf32, #tpu.memory_space<vmem>>, vector<256x256xf32>
    %cst_8 = arith.constant dense<0.000000e+00> : vector<256x16xf32>
    %9 = tpu.matmul %8, %7, %cst_8 {dimension_numbers = #tpu.dot_dimension_numbers<[1], [0], [0], [1], [0, 0, 1, 1], [], []>} : vector<256x256xf32>, vector<256x16xf32>, vector<256x16xf32> -> vector<256x16xf32>
    %c0_9 = arith.constant 0 : index
    %c0_10 = arith.constant 0 : index
    %10 = vector.load %arg5[%c0_9, %c0_10] : memref<256x1xf32, #tpu.memory_space<vmem>>, vector<256x1xf32>
    %11 = vector.broadcast %10 : vector<256x1xf32> to vector<256x16xf32>
    %12 = arith.addf %9, %11 : vector<256x16xf32>
    %cst_11 = arith.constant 0.000000e+00 : f32
    %13 = vector.broadcast %cst_11 : f32 to vector<256x16xf32>
    %14 = arith.maximumf %12, %13 : vector<256x16xf32>
    %c0_12 = arith.constant 0 : index
    %c0_13 = arith.constant 0 : index
    %15 = vector.load %arg6[%c0_12, %c0_13] : memref<1x256xf32, #tpu.memory_space<vmem>>, vector<1x256xf32>
    %cst_14 = arith.constant dense<0.000000e+00> : vector<1x16xf32>
    %16 = tpu.matmul %15, %14, %cst_14 {dimension_numbers = #tpu.dot_dimension_numbers<[1], [0], [0], [1], [0, 0, 1, 1], [], []>} : vector<1x256xf32>, vector<256x16xf32>, vector<1x16xf32> -> vector<1x16xf32>
    %c0_15 = arith.constant 0 : index
    %c0_16 = arith.constant 0 : index
    %17 = vector.load %arg7[%c0_15, %c0_16] : memref<1x1xf32, #tpu.memory_space<vmem>>, vector<1x1xf32>
    %18 = vector.broadcast %17 : vector<1x1xf32> to vector<1x16xf32>
    %19 = arith.addf %16, %18 : vector<1x16xf32>
    %c0_17 = arith.constant 0 : index
    %c0_18 = arith.constant 0 : index
    %20 = vector.load %arg8[%c0_17, %c0_18] : memref<1x16xf32, #tpu.memory_space<vmem>>, vector<1x16xf32>
    tpu.vector_store %arg8[%c0_17, %c0_18], %19 {strides = array<i32>} : memref<1x16xf32, #tpu.memory_space<vmem>>, vector<1x16xf32>,
    return
  }
  func.func @transform_0(%arg0: i32) -> (i32, i32) {
    %c0_i32 = arith.constant 0 : i32
    %c0_i32_0 = arith.constant 0 : i32
    return %arg0, %c0_i32 : i32, i32
  }
  func.func @transform_1(%arg0: i32) -> (i32, i32) {
    %c0_i32 = arith.constant 0 : i32
    %c0_i32_0 = arith.constant 0 : i32
    %c0_i32_1 = arith.constant 0 : i32
    return %c0_i32, %c0_i32_0 : i32, i32
  }
  func.func @transform_2(%arg0: i32) -> (i32, i32) {
    %c0_i32 = arith.constant 0 : i32
    %c0_i32_0 = arith.constant 0 : i32
    %c0_i32_1 = arith.constant 0 : i32
    return %c0_i32, %c0_i32_0 : i32, i32
  }
  func.func @transform_3(%arg0: i32) -> (i32, i32) {
    %c0_i32 = arith.constant 0 : i32
    %c0_i32_0 = arith.constant 0 : i32
    %c0_i32_1 = arith.constant 0 : i32
    return %c0_i32, %c0_i32_0 : i32, i32
  }
  func.func @transform_4(%arg0: i32) -> (i32, i32) {
    %c0_i32 = arith.constant 0 : i32
    %c0_i32_0 = arith.constant 0 : i32
    %c0_i32_1 = arith.constant 0 : i32
    return %c0_i32, %c0_i32_0 : i32, i32
  }
  func.func @transform_5(%arg0: i32) -> (i32, i32) {
    %c0_i32 = arith.constant 0 : i32
    %c0_i32_0 = arith.constant 0 : i32
    %c0_i32_1 = arith.constant 0 : i32
    return %c0_i32, %c0_i32_0 : i32, i32
  }
  func.func @transform_6(%arg0: i32) -> (i32, i32) {
    %c0_i32 = arith.constant 0 : i32
    %c0_i32_0 = arith.constant 0 : i32
    %c0_i32_1 = arith.constant 0 : i32
    return %c0_i32, %c0_i32_0 : i32, i32
  }
  func.func @transform_7(%arg0: i32) -> (i32, i32) {
    %c0_i32 = arith.constant 0 : i32
    %c0_i32_0 = arith.constant 0 : i32
    return %c0_i32, %arg0 : i32, i32
  }
}

</mosaic_0001>

<llo_original>
// kernel: critic_forward.1
$region0: #{critic_forward.1}
  #allocation0 [shape = 'u32[]', space=smem, size = 0x4, offset = 0x4, fixed_abs, tag = 'smem constant byte address 0x4 - core index']
  #allocation1 [shape = 'u32[144,128]{1,0:T(1,128)}', space=vmem, size = 0x12000, scoped, tag = 'internal scratch']
  #allocation2 [shape = 'f32[1,1]{1,0:T(1,128)S(1)}', space=vmem, size = 0x200, scoped, tag = 'scoped memory for critic_forward.1']
  %s0 = inlined_call_operand.vmem [shape: f32[16,8], index: 0, kind: input, shape index: {}]
  %s1 = inlined_call_operand.vmem [shape: f32[256,8], index: 1, kind: input, shape index: {}]
  %s2 = inlined_call_operand.vmem [shape: f32[256,1], index: 2, kind: input, shape index: {}]
  %s3 = inlined_call_operand.vmem [shape: f32[256,256], index: 3, kind: input, shape index: {}]
  %s4 = inlined_call_operand.vmem [shape: f32[256,1], index: 4, kind: input, shape index: {}]
  %s5 = inlined_call_operand.vmem [shape: f32[1,256], index: 5, kind: input, shape index: {}]
  %s6 = inlined_call_operand.<no memory space> [shape: f32[1,1], index: 6, kind: input, shape index: {}]
  %s7 = inlined_call_operand.hbm [shape: f32[1,16], index: 7, kind: output, shape index: {}]
  %s8 = sld [smem:[#allocation0]]
  $region38: #{critic_forward.1} parent=0
    _
  %s10 = ssub.s32 1, %s8
  %s11 = scalar_select 0, %s10, %s8
  %v12 = vstv %s6
  %13 = vst [vmem:[#allocation2] sm:$0x1] %v12
  $region1: #{critic_forward.1} parent=0
    #allocation3 [shape = 'u8[512]{0}', space=vmem, size = 0x400, scoped, tag = 'output window, operand 0, single buffered']
    #allocation4 [shape = 's32[1]{0}', space=sflag, size = 0x4, scoped, tag = 'scoped memory for critic_forward.1']
    %14 = vsyncpa [#allocation4], 0
    // Predicated region
    $region2: #{critic_forward.1} parent=1 // pred_check
      _
    $region3: #{critic_forward.1} parent=1 // pred_check_branch
      %16 = sbr.rel (0) target = $region5
    $region4: #{critic_forward.1} parent=1 // pred_region
      _
    $region5: #{critic_forward.1} parent=1 // pred_fallthru
      _
    // Predicated region
    $region6: #{critic_forward.1} parent=1 // pred_check
      _
    $region7: #{critic_forward.1} parent=1 // pred_check_branch
      %18 = sbr.rel (0) target = $region9
    $region8: #{critic_forward.1} parent=1 // pred_region
      _
    $region9: #{critic_forward.1} parent=1 // pred_fallthru
      _
    // Predicated region
    $region10: #{critic_forward.1} parent=1 // pred_check
      _
    $region11: #{critic_forward.1} parent=1 // pred_check_branch
      %20 = sbr.rel (0) target = $region13
    $region12: #{critic_forward.1} parent=1 // pred_region
      _
    $region13: #{critic_forward.1} parent=1 // pred_fallthru
      _
    // Predicated region
    $region14: #{critic_forward.1} parent=1 // pred_check
      _
    $region15: #{critic_forward.1} parent=1 // pred_check_branch
      %22 = sbr.rel (0) target = $region17
    $region16: #{critic_forward.1} parent=1 // pred_region
      _
    $region17: #{critic_forward.1} parent=1 // pred_fallthru
      _
    // Predicated region
    $region18: #{critic_forward.1} parent=1 // pred_check
      _
    $region19: #{critic_forward.1} parent=1 // pred_check_branch
      %24 = sbr.rel (0) target = $region21
    $region20: #{critic_forward.1} parent=1 // pred_region
      _
    $region21: #{critic_forward.1} parent=1 // pred_fallthru
      _
    // Predicated region
    $region22: #{critic_forward.1} parent=1 // pred_check
      _
    $region23: #{critic_forward.1} parent=1 // pred_check_branch
      %26 = sbr.rel (0) target = $region25
    $region24: #{critic_forward.1} parent=1 // pred_region
      _
    $region25: #{critic_forward.1} parent=1 // pred_fallthru
      _
    // Predicated region
    $region26: #{critic_forward.1} parent=1 // pred_check
      _
    $region27: #{critic_forward.1} parent=1 // pred_check_branch
      %28 = sbr.rel (0) target = $region29
    $region28: #{critic_forward.1} parent=1 // pred_region
      _
    $region29: #{critic_forward.1} parent=1 // pred_fallthru
      _
    %v29 = vld [vmem:[%s0] sm:$0xff]
    %v30 = vld [vmem:[%s0 + $0x8] sm:$0xff]
    %v31 = vld [vmem:[%s1] sm:$0xff]
    %v32 = vld [vmem:[%s1 + $0x8] sm:$0xff]
    %v33 = vld [vmem:[%s1 + $0x10] sm:$0xff]
    %v34 = vld [vmem:[%s1 + $0x18] sm:$0xff]
    %v35 = vld [vmem:[%s1 + $0x20] sm:$0xff]
    %v36 = vld [vmem:[%s1 + $0x28] sm:$0xff]
    %v37 = vld [vmem:[%s1 + $0x30] sm:$0xff]
    %v38 = vld [vmem:[%s1 + $0x38] sm:$0xff]
    %v39 = vld [vmem:[%s1 + $0x40] sm:$0xff]
    %v40 = vld [vmem:[%s1 + $0x48] sm:$0xff]
    %v41 = vld [vmem:[%s1 + $0x50] sm:$0xff]
    %v42 = vld [vmem:[%s1 + $0x58] sm:$0xff]
    %v43 = vld [vmem:[%s1 + $0x60] sm:$0xff]
    %v44 = vld [vmem:[%s1 + $0x68] sm:$0xff]
    %v45 = vld [vmem:[%s1 + $0x70] sm:$0xff]
    %v46 = vld [vmem:[%s1 + $0x78] sm:$0xff]
    %v47 = vld [vmem:[%s1 + $0x80] sm:$0xff]
    %v48 = vld [vmem:[%s1 + $0x88] sm:$0xff]
    %v49 = vld [vmem:[%s1 + $0x90] sm:$0xff]
    %v50 = vld [vmem:[%s1 + $0x98] sm:$0xff]
    %v51 = vld [vmem:[%s1 + $0xa0] sm:$0xff]
    %v52 = vld [vmem:[%s1 + $0xa8] sm:$0xff]
    %v53 = vld [vmem:[%s1 + $0xb0] sm:$0xff]
    %v54 = vld [vmem:[%s1 + $0xb8] sm:$0xff]
    %v55 = vld [vmem:[%s1 + $0xc0] sm:$0xff]
    %v56 = vld [vmem:[%s1 + $0xc8] sm:$0xff]
    %v57 = vld [vmem:[%s1 + $0xd0] sm:$0xff]
    %v58 = vld [vmem:[%s1 + $0xd8] sm:$0xff]
    %v59 = vld [vmem:[%s1 + $0xe0] sm:$0xff]
    %v60 = vld [vmem:[%s1 + $0xe8] sm:$0xff]
    %v61 = vld [vmem:[%s1 + $0xf0] sm:$0xff]
    %v62 = vld [vmem:[%s1 + $0xf8] sm:$0xff]
    %v63 = vld [vmem:[%s2] sm:$0xff]
    %v64 = vld [vmem:[%s2 + $0x8] sm:$0xff]
    %v65 = vld [vmem:[%s2 + $0x10] sm:$0xff]
    %v66 = vld [vmem:[%s2 + $0x18] sm:$0xff]
    %v67 = vld [vmem:[%s2 + $0x20] sm:$0xff]
    %v68 = vld [vmem:[%s2 + $0x28] sm:$0xff]
    %v69 = vld [vmem:[%s2 + $0x30] sm:$0xff]
    %v70 = vld [vmem:[%s2 + $0x38] sm:$0xff]
    %v71 = vld [vmem:[%s2 + $0x40] sm:$0xff]
    %v72 = vld [vmem:[%s2 + $0x48] sm:$0xff]
    %v73 = vld [vmem:[%s2 + $0x50] sm:$0xff]
    %v74 = vld [vmem:[%s2 + $0x58] sm:$0xff]
    %v75 = vld [vmem:[%s2 + $0x60] sm:$0xff]
    %v76 = vld [vmem:[%s2 + $0x68] sm:$0xff]
    %v77 = vld [vmem:[%s2 + $0x70] sm:$0xff]
    %v78 = vld [vmem:[%s2 + $0x78] sm:$0xff]
    %v79 = vld [vmem:[%s2 + $0x80] sm:$0xff]
    %v80 = vld [vmem:[%s2 + $0x88] sm:$0xff]
    %v81 = vld [vmem:[%s2 + $0x90] sm:$0xff]
    %v82 = vld [vmem:[%s2 + $0x98] sm:$0xff]
    %v83 = vld [vmem:[%s2 + $0xa0] sm:$0xff]
    %v84 = vld [vmem:[%s2 + $0xa8] sm:$0xff]
    %v85 = vld [vmem:[%s2 + $0xb0] sm:$0xff]
    %v86 = vld [vmem:[%s2 + $0xb8] sm:$0xff]
    %v87 = vld [vmem:[%s2 + $0xc0] sm:$0xff]
    %v88 = vld [vmem:[%s2 + $0xc8] sm:$0xff]
    %v89 = vld [vmem:[%s2 + $0xd0] sm:$0xff]
    %v90 = vld [vmem:[%s2 + $0xd8] sm:$0xff]
    %v91 = vld [vmem:[%s2 + $0xe0] sm:$0xff]
    %v92 = vld [vmem:[%s2 + $0xe8] sm:$0xff]
    %v93 = vld [vmem:[%s2 + $0xf0] sm:$0xff]
    %v94 = vld [vmem:[%s2 + $0xf8] sm:$0xff]
    %96 = vset.pattern.permute.xlu0 0
    %97 = vperm.xlu0 %96, %v63
    %v98 = vpop.permute.xlu0 %97
    %101 = vset.pattern.permute.xlu0 0
    %102 = vperm.xlu0 %101, %v64
    %v103 = vpop.permute.xlu0 %102
    %106 = vset.pattern.permute.xlu0 0
    %107 = vperm.xlu0 %106, %v65
    %v108 = vpop.permute.xlu0 %107
    %111 = vset.pattern.permute.xlu0 0
    %112 = vperm.xlu0 %111, %v66
    %v113 = vpop.permute.xlu0 %112
    %116 = vset.pattern.permute.xlu0 0
    %117 = vperm.xlu0 %116, %v67
    %v118 = vpop.permute.xlu0 %117
    %121 = vset.pattern.permute.xlu0 0
    %122 = vperm.xlu0 %121, %v68
    %v123 = vpop.permute.xlu0 %122
    %126 = vset.pattern.permute.xlu0 0
    %127 = vperm.xlu0 %126, %v69
    %v128 = vpop.permute.xlu0 %127
    %131 = vset.pattern.permute.xlu0 0
    %132 = vperm.xlu0 %131, %v70
    %v133 = vpop.permute.xlu0 %132
    %136 = vset.pattern.permute.xlu0 0
    %137 = vperm.xlu0 %136, %v71
    %v138 = vpop.permute.xlu0 %137
    %141 = vset.pattern.permute.xlu0 0
    %142 = vperm.xlu0 %141, %v72
    %v143 = vpop.permute.xlu0 %142
    %146 = vset.pattern.permute.xlu0 0
    %147 = vperm.xlu0 %146, %v73
    %v148 = vpop.permute.xlu0 %147
    %151 = vset.pattern.permute.xlu0 0
    %152 = vperm.xlu0 %151, %v74
    %v153 = vpop.permute.xlu0 %152
    %156 = vset.pattern.permute.xlu0 0
    %157 = vperm.xlu0 %156, %v75
    %v158 = vpop.permute.xlu0 %157
    %161 = vset.pattern.permute.xlu0 0
    %162 = vperm.xlu0 %161, %v76
    %v163 = vpop.permute.xlu0 %162
    %166 = vset.pattern.permute.xlu0 0
    %167 = vperm.xlu0 %166, %v77
    %v168 = vpop.permute.xlu0 %167
    %171 = vset.pattern.permute.xlu0 0
    %172 = vperm.xlu0 %171, %v78
    %v173 = vpop.permute.xlu0 %172
    %176 = vset.pattern.permute.xlu0 0
    %177 = vperm.xlu0 %176, %v79
    %v178 = vpop.permute.xlu0 %177
    %181 = vset.pattern.permute.xlu0 0
    %182 = vperm.xlu0 %181, %v80
    %v183 = vpop.permute.xlu0 %182
    %186 = vset.pattern.permute.xlu0 0
    %187 = vperm.xlu0 %186, %v81
    %v188 = vpop.permute.xlu0 %187
    %191 = vset.pattern.permute.xlu0 0
    %192 = vperm.xlu0 %191, %v82
    %v193 = vpop.permute.xlu0 %192
    %196 = vset.pattern.permute.xlu0 0
    %197 = vperm.xlu0 %196, %v83
    %v198 = vpop.permute.xlu0 %197
    %201 = vset.pattern.permute.xlu0 0
    %202 = vperm.xlu0 %201, %v84
    %v203 = vpop.permute.xlu0 %202
    %206 = vset.pattern.permute.xlu0 0
    %207 = vperm.xlu0 %206, %v85
    %v208 = vpop.permute.xlu0 %207
    %211 = vset.pattern.permute.xlu0 0
    %212 = vperm.xlu0 %211, %v86
    %v213 = vpop.permute.xlu0 %212
    %216 = vset.pattern.permute.xlu0 0
    %217 = vperm.xlu0 %216, %v87
    %v218 = vpop.permute.xlu0 %217
    %221 = vset.pattern.permute.xlu0 0
    %222 = vperm.xlu0 %221, %v88
    %v223 = vpop.permute.xlu0 %222
    %226 = vset.pattern.permute.xlu0 0
    %227 = vperm.xlu0 %226, %v89
    %v228 = vpop.permute.xlu0 %227
    %231 = vset.pattern.permute.xlu0 0
    %232 = vperm.xlu0 %231, %v90
    %v233 = vpop.permute.xlu0 %232
    %236 = vset.pattern.permute.xlu0 0
    %237 = vperm.xlu0 %236, %v91
    %v238 = vpop.permute.xlu0 %237
    %241 = vset.pattern.permute.xlu0 0
    %242 = vperm.xlu0 %241, %v92
    %v243 = vpop.permute.xlu0 %242
    %246 = vset.pattern.permute.xlu0 0
    %247 = vperm.xlu0 %246, %v93
    %v248 = vpop.permute.xlu0 %247
    %251 = vset.pattern.permute.xlu0 0
    %252 = vperm.xlu0 %251, %v94
    %v253 = vpop.permute.xlu0 %252
    %vm255 = vcmask 64512
    %v257 = vsel %vm255, %v31, 0
    %v260 = vsel %vm255, %v32, 0
    %v263 = vsel %vm255, %v33, 0
    %v266 = vsel %vm255, %v34, 0
    %v269 = vsel %vm255, %v35, 0
    %v272 = vsel %vm255, %v36, 0
    %v275 = vsel %vm255, %v37, 0
    %v278 = vsel %vm255, %v38, 0
    %v281 = vsel %vm255, %v39, 0
    %v284 = vsel %vm255, %v40, 0
    %v287 = vsel %vm255, %v41, 0
    %v290 = vsel %vm255, %v42, 0
    %v293 = vsel %vm255, %v43, 0
    %v296 = vsel %vm255, %v44, 0
    %v299 = vsel %vm255, %v45, 0
    %v302 = vsel %vm255, %v46, 0
    %v305 = vsel %vm255, %v47, 0
    %v308 = vsel %vm255, %v48, 0
    %v311 = vsel %vm255, %v49, 0
    %v314 = vsel %vm255, %v50, 0
    %v317 = vsel %vm255, %v51, 0
    %v320 = vsel %vm255, %v52, 0
    %v323 = vsel %vm255, %v53, 0
    %v326 = vsel %vm255, %v54, 0
    %v329 = vsel %vm255, %v55, 0
    %v332 = vsel %vm255, %v56, 0
    %v335 = vsel %vm255, %v57, 0
    %v338 = vsel %vm255, %v58, 0
    %v341 = vsel %vm255, %v59, 0
    %v344 = vsel %vm255, %v60, 0
    %v347 = vsel %vm255, %v61, 0
    %v350 = vsel %vm255, %v62, 0
    %v353 = vsel %vm255, %v29, 0
    %v356 = vsel %vm255, %v30, 0
    %358 = vmatprep.subr.mxu0 0.0
    %359 = vmatpush1.xpose.msra.mxu0 %v353
    %360 = vmatprep.subr.mxu0 0.0
    %361 = vmatpush1.xpose.msra.mxu0 %v356
    %362 = vmatprep.subr.mxu0 0.0
    %363 = vmatpush1.xpose.msra.mxu0 0.0
    %364 = vmatprep.subr.mxu0 0.0
    %365 = vmatpush1.xpose.msra.mxu0 0.0
    %366 = vmatprep.subr.mxu0 0.0
    %367 = vmatpush1.xpose.msra.mxu0 0.0
    %368 = vmatprep.subr.mxu0 0.0
    %369 = vmatpush1.xpose.msra.mxu0 0.0
    %370 = vmatprep.subr.mxu0 0.0
    %371 = vmatpush1.xpose.msra.mxu0 0.0
    %372 = vmatprep.subr.mxu0 0.0
    %373 = vmatpush1.xpose.msra.mxu0 0.0
    %374 = vmatprep.subr.mxu0 0.0
    %375 = vmatpush1.xpose.msra.mxu0 0.0
    %376 = vmatprep.subr.mxu0 0.0
    %377 = vmatpush1.xpose.msra.mxu0 0.0
    %378 = vmatprep.subr.mxu0 0.0
    %379 = vmatpush1.xpose.msra.mxu0 0.0
    %380 = vmatprep.subr.mxu0 0.0
    %381 = vmatpush1.xpose.msra.mxu0 0.0
    %382 = vmatprep.subr.mxu0 0.0
    %383 = vmatpush1.xpose.msra.mxu0 0.0
    %384 = vmatprep.subr.mxu0 0.0
    %385 = vmatpush1.xpose.msra.mxu0 0.0
    %386 = vmatprep.subr.mxu0 0.0
    %387 = vmatpush1.xpose.msra.mxu0 0.0
    %388 = vmatprep.subr.mxu0 0.0
    %389 = vmatpush1.xpose.msra.mxu0 0.0
    %390 = vmatprep.subr.mxu0 0.0
    %391 = vmatpush1.xpose.msra.mxu0 0.0
    %392 = vmatprep.subr.mxu0 0.0
    %393 = vmatpush1.xpose.msra.mxu0 0.0
    %394 = vmatprep.subr.mxu0 0.0
    %395 = vmatpush1.xpose.msra.mxu0 0.0
    %396 = vmatprep.subr.mxu0 0.0
    %397 = vmatpush1.xpose.msra.mxu0 0.0
    %398 = vmatprep.subr.mxu0 0.0
    %399 = vmatpush1.xpose.msra.mxu0 0.0
    %400 = vmatprep.subr.mxu0 0.0
    %401 = vmatpush1.xpose.msra.mxu0 0.0
    %402 = vmatprep.subr.mxu0 0.0
    %403 = vmatpush1.xpose.msra.mxu0 0.0
    %404 = vmatprep.subr.mxu0 0.0
    %405 = vmatpush1.xpose.msra.mxu0 0.0
    %406 = vmatprep.subr.mxu0 0.0
    %407 = vmatpush1.xpose.msra.mxu0 0.0
    %408 = vmatprep.subr.mxu0 0.0
    %409 = vmatpush1.xpose.msra.mxu0 0.0
    %410 = vmatprep.subr.mxu0 0.0
    %411 = vmatpush1.xpose.msra.mxu0 0.0
    %412 = vmatprep.subr.mxu0 0.0
    %413 = vmatpush1.xpose.msra.mxu0 0.0
    %414 = vmatprep.subr.mxu0 0.0
    %415 = vmatpush1.xpose.msra.mxu0 0.0
    %416 = vmatprep.subr.mxu0 0.0
    %417 = vmatpush1.xpose.msra.mxu0 0.0
    %418 = vmatprep.subr.mxu0 0.0
    %419 = vmatpush1.xpose.msra.mxu0 0.0
    %420 = vmatprep.subr.mxu0 0.0
    %421 = vmatpush1.xpose.msra.mxu0 0.0
    %422 = vmatprep.mubr.f32.mxu0 0.0
    %423 = vmatmul.mubr.f32.gmra.mrb[0].mxu0 %v257
    %v424 = vpop.f32.mrb[0].mxu0
    %v425 = vadd.f32 %v98, %v424
    %v426 = vpop.f32.mrb[0].mxu0
    %427 = vmatprep.mubr.f32.mxu0 0.0
    %428 = vmatmul.mubr.f32.gmra.mrb[0].mxu0 %v260
    %v429 = vpop.f32.mrb[0].mxu0
    %v430 = vadd.f32 %v103, %v429
    %v431 = vpop.f32.mrb[0].mxu0
    %432 = vmatprep.mubr.f32.mxu0 0.0
    %433 = vmatmul.mubr.f32.gmra.mrb[0].mxu0 %v263
    %v434 = vpop.f32.mrb[0].mxu0
    %v435 = vadd.f32 %v108, %v434
    %v436 = vpop.f32.mrb[0].mxu0
    %437 = vmatprep.mubr.f32.mxu0 0.0
    %438 = vmatmul.mubr.f32.gmra.mrb[0].mxu0 %v266
    %v439 = vpop.f32.mrb[0].mxu0
    %v440 = vadd.f32 %v113, %v439
    %v441 = vpop.f32.mrb[0].mxu0
    %442 = vmatprep.mubr.f32.mxu0 0.0
    %443 = vmatmul.mubr.f32.gmra.mrb[0].mxu0 %v269
    %v444 = vpop.f32.mrb[0].mxu0
    %v445 = vadd.f32 %v118, %v444
    %v446 = vpop.f32.mrb[0].mxu0
    %447 = vmatprep.mubr.f32.mxu0 0.0
    %448 = vmatmul.mubr.f32.gmra.mrb[0].mxu0 %v272
    %v449 = vpop.f32.mrb[0].mxu0
    %v450 = vadd.f32 %v123, %v449
    %v451 = vpop.f32.mrb[0].mxu0
    %452 = vmatprep.mubr.f32.mxu0 0.0
    %453 = vmatmul.mubr.f32.gmra.mrb[0].mxu0 %v275
    %v454 = vpop.f32.mrb[0].mxu0
    %v455 = vadd.f32 %v128, %v454
    %v456 = vpop.f32.mrb[0].mxu0
    %457 = vmatprep.mubr.f32.mxu0 0.0
    %458 = vmatmul.mubr.f32.gmra.mrb[0].mxu0 %v278
    %v459 = vpop.f32.mrb[0].mxu0
    %v460 = vadd.f32 %v133, %v459
    %v461 = vpop.f32.mrb[0].mxu0
    %462 = vmatprep.mubr.f32.mxu0 0.0
    %463 = vmatmul.mubr.f32.gmra.mrb[0].mxu0 %v281
    %v464 = vpop.f32.mrb[0].mxu0
    %v465 = vadd.f32 %v138, %v464
    %v466 = vpop.f32.mrb[0].mxu0
    %467 = vmatprep.mubr.f32.mxu0 0.0
    %468 = vmatmul.mubr.f32.gmra.mrb[0].mxu0 %v284
    %v469 = vpop.f32.mrb[0].mxu0
    %v470 = vadd.f32 %v143, %v469
    %v471 = vpop.f32.mrb[0].mxu0
    %472 = vmatprep.mubr.f32.mxu0 0.0
    %473 = vmatmul.mubr.f32.gmra.mrb[0].mxu0 %v287
    %v474 = vpop.f32.mrb[0].mxu0
    %v475 = vadd.f32 %v148, %v474
    %v476 = vpop.f32.mrb[0].mxu0
    %477 = vmatprep.mubr.f32.mxu0 0.0
    %478 = vmatmul.mubr.f32.gmra.mrb[0].mxu0 %v290
    %v479 = vpop.f32.mrb[0].mxu0
    %v480 = vadd.f32 %v153, %v479
    %v481 = vpop.f32.mrb[0].mxu0
    %482 = vmatprep.mubr.f32.mxu0 0.0
    %483 = vmatmul.mubr.f32.gmra.mrb[0].mxu0 %v293
    %v484 = vpop.f32.mrb[0].mxu0
    %v485 = vadd.f32 %v158, %v484
    %v486 = vpop.f32.mrb[0].mxu0
    %487 = vmatprep.mubr.f32.mxu0 0.0
    %488 = vmatmul.mubr.f32.gmra.mrb[0].mxu0 %v296
    %v489 = vpop.f32.mrb[0].mxu0
    %v490 = vadd.f32 %v163, %v489
    %v491 = vpop.f32.mrb[0].mxu0
    %492 = vmatprep.mubr.f32.mxu0 0.0
    %493 = vmatmul.mubr.f32.gmra.mrb[0].mxu0 %v299
    %v494 = vpop.f32.mrb[0].mxu0
    %v495 = vadd.f32 %v168, %v494
    %v496 = vpop.f32.mrb[0].mxu0
    %497 = vmatprep.mubr.f32.mxu0 0.0
    %498 = vmatmul.mubr.f32.gmra.mrb[0].mxu0 %v302
    %v499 = vpop.f32.mrb[0].mxu0
    %v500 = vadd.f32 %v173, %v499
    %v501 = vpop.f32.mrb[0].mxu0
    %502 = vmatprep.mubr.f32.mxu0 0.0
    %503 = vmatmul.mubr.f32.gmra.mrb[0].mxu0 %v305
    %v504 = vpop.f32.mrb[0].mxu0
    %v505 = vadd.f32 %v178, %v504
    %v506 = vpop.f32.mrb[0].mxu0
    %507 = vmatprep.mubr.f32.mxu0 0.0
    %508 = vmatmul.mubr.f32.gmra.mrb[0].mxu0 %v308
    %v509 = vpop.f32.mrb[0].mxu0
    %v510 = vadd.f32 %v183, %v509
    %v511 = vpop.f32.mrb[0].mxu0
    %512 = vmatprep.mubr.f32.mxu0 0.0
    %513 = vmatmul.mubr.f32.gmra.mrb[0].mxu0 %v311
    %v514 = vpop.f32.mrb[0].mxu0
    %v515 = vadd.f32 %v188, %v514
    %v516 = vpop.f32.mrb[0].mxu0
    %517 = vmatprep.mubr.f32.mxu0 0.0
    %518 = vmatmul.mubr.f32.gmra.mrb[0].mxu0 %v314
    %v519 = vpop.f32.mrb[0].mxu0
    %v520 = vadd.f32 %v193, %v519
    %v521 = vpop.f32.mrb[0].mxu0
    %522 = vmatprep.mubr.f32.mxu0 0.0
    %523 = vmatmul.mubr.f32.gmra.mrb[0].mxu0 %v317
    %v524 = vpop.f32.mrb[0].mxu0
    %v525 = vadd.f32 %v198, %v524
    %v526 = vpop.f32.mrb[0].mxu0
    %527 = vmatprep.mubr.f32.mxu0 0.0
    %528 = vmatmul.mubr.f32.gmra.mrb[0].mxu0 %v320
    %v529 = vpop.f32.mrb[0].mxu0
    %v530 = vadd.f32 %v203, %v529
    %v531 = vpop.f32.mrb[0].mxu0
    %532 = vmatprep.mubr.f32.mxu0 0.0
    %533 = vmatmul.mubr.f32.gmra.mrb[0].mxu0 %v323
    %v534 = vpop.f32.mrb[0].mxu0
    %v535 = vadd.f32 %v208, %v534
    %v536 = vpop.f32.mrb[0].mxu0
    %537 = vmatprep.mubr.f32.mxu0 0.0
    %538 = vmatmul.mubr.f32.gmra.mrb[0].mxu0 %v326
    %v539 = vpop.f32.mrb[0].mxu0
    %v540 = vadd.f32 %v213, %v539
    %v541 = vpop.f32.mrb[0].mxu0
    %542 = vmatprep.mubr.f32.mxu0 0.0
    %543 = vmatmul.mubr.f32.gmra.mrb[0].mxu0 %v329
    %v544 = vpop.f32.mrb[0].mxu0
    %v545 = vadd.f32 %v218, %v544
    %v546 = vpop.f32.mrb[0].mxu0
    %547 = vmatprep.mubr.f32.mxu0 0.0
    %548 = vmatmul.mubr.f32.gmra.mrb[0].mxu0 %v332
    %v549 = vpop.f32.mrb[0].mxu0
    %v550 = vadd.f32 %v223, %v549
    %v551 = vpop.f32.mrb[0].mxu0
    %552 = vmatprep.mubr.f32.mxu0 0.0
    %553 = vmatmul.mubr.f32.gmra.mrb[0].mxu0 %v335
    %v554 = vpop.f32.mrb[0].mxu0
    %v555 = vadd.f32 %v228, %v554
    %v556 = vpop.f32.mrb[0].mxu0
    %557 = vmatprep.mubr.f32.mxu0 0.0
    %558 = vmatmul.mubr.f32.gmra.mrb[0].mxu0 %v338
    %v559 = vpop.f32.mrb[0].mxu0
    %v560 = vadd.f32 %v233, %v559
    %v561 = vpop.f32.mrb[0].mxu0
    %562 = vmatprep.mubr.f32.mxu0 0.0
    %563 = vmatmul.mubr.f32.gmra.mrb[0].mxu0 %v341
    %v564 = vpop.f32.mrb[0].mxu0
    %v565 = vadd.f32 %v238, %v564
    %v566 = vpop.f32.mrb[0].mxu0
    %567 = vmatprep.mubr.f32.mxu0 0.0
    %568 = vmatmul.mubr.f32.gmra.mrb[0].mxu0 %v344
    %v569 = vpop.f32.mrb[0].mxu0
    %v570 = vadd.f32 %v243, %v569
    %v571 = vpop.f32.mrb[0].mxu0
    %572 = vmatprep.mubr.f32.mxu0 0.0
    %573 = vmatmul.mubr.f32.gmra.mrb[0].mxu0 %v347
    %v574 = vpop.f32.mrb[0].mxu0
    %v575 = vadd.f32 %v248, %v574
    %v576 = vpop.f32.mrb[0].mxu0
    %577 = vmatprep.mubr.f32.mxu0 0.0
    %578 = vmatmul.mubr.f32.gmra.mrb[0].mxu0 %v350
    %v579 = vpop.f32.mrb[0].mxu0
    %v580 = vadd.f32 %v253, %v579
    %v581 = vpop.f32.mrb[0].mxu0
    %582 = vdwg.mxu0
    %v583 = vmax.f32 %v425, 0.0
    %v584 = vmax.f32 %v430, 0.0
    %v585 = vmax.f32 %v435, 0.0
    %v586 = vmax.f32 %v440, 0.0
    %v587 = vmax.f32 %v445, 0.0
    %v588 = vmax.f32 %v450, 0.0
    %v589 = vmax.f32 %v455, 0.0
    %v590 = vmax.f32 %v460, 0.0
    %v591 = vmax.f32 %v465, 0.0
    %v592 = vmax.f32 %v470, 0.0
    %v593 = vmax.f32 %v475, 0.0
    %v594 = vmax.f32 %v480, 0.0
    %v595 = vmax.f32 %v485, 0.0
    %v596 = vmax.f32 %v490, 0.0
    %v597 = vmax.f32 %v495, 0.0
    %v598 = vmax.f32 %v500, 0.0
    %v599 = vmax.f32 %v505, 0.0
    %v600 = vmax.f32 %v510, 0.0
    %v601 = vmax.f32 %v515, 0.0
    %v602 = vmax.f32 %v520, 0.0
    %v603 = vmax.f32 %v525, 0.0
    %v604 = vmax.f32 %v530, 0.0
    %v605 = vmax.f32 %v535, 0.0
    %v606 = vmax.f32 %v540, 0.0
    %v607 = vmax.f32 %v545, 0.0
    %v608 = vmax.f32 %v550, 0.0
    %v609 = vmax.f32 %v555, 0.0
    %v610 = vmax.f32 %v560, 0.0
    %v611 = vmax.f32 %v565, 0.0
    %v612 = vmax.f32 %v570, 0.0
    %v613 = vmax.f32 %v575, 0.0
    %v614 = vmax.f32 %v580, 0.0
    %v615 = vld [vmem:[%s3] sm:$0xff]
    %v616 = vld [vmem:[%s3 + $0x8] sm:$0xff]
    %v617 = vld [vmem:[%s3 + $0x10] sm:$0xff]
    %v618 = vld [vmem:[%s3 + $0x18] sm:$0xff]
    %v619 = vld [vmem:[%s3 + $0x20] sm:$0xff]
    %v620 = vld [vmem:[%s3 + $0x28] sm:$0xff]
    %v621 = vld [vmem:[%s3 + $0x30] sm:$0xff]
    %v622 = vld [vmem:[%s3 + $0x38] sm:$0xff]
    %v623 = vld [vmem:[%s3 + $0x40] sm:$0xff]
    %v624 = vld [vmem:[%s3 + $0x48] sm:$0xff]
    %v625 = vld [vmem:[%s3 + $0x50] sm:$0xff]
    %v626 = vld [vmem:[%s3 + $0x58] sm:$0xff]
    %v627 = vld [vmem:[%s3 + $0x60] sm:$0xff]
    %v628 = vld [vmem:[%s3 + $0x68] sm:$0xff]
    %v629 = vld [vmem:[%s3 + $0x70] sm:$0xff]
    %v630 = vld [vmem:[%s3 + $0x78] sm:$0xff]
    %v631 = vld [vmem:[%s3 + $0x80] sm:$0xff]
    %v632 = vld [vmem:[%s3 + $0x88] sm:$0xff]
    %v633 = vld [vmem:[%s3 + $0x90] sm:$0xff]
    %v634 = vld [vmem:[%s3 + $0x98] sm:$0xff]
    %v635 = vld [vmem:[%s3 + $0xa0] sm:$0xff]
    %v636 = vld [vmem:[%s3 + $0xa8] sm:$0xff]
    %v637 = vld [vmem:[%s3 + $0xb0] sm:$0xff]
    %v638 = vld [vmem:[%s3 + $0xb8] sm:$0xff]
    %v639 = vld [vmem:[%s3 + $0xc0] sm:$0xff]
    %v640 = vld [vmem:[%s3 + $0xc8] sm:$0xff]
    %v641 = vld [vmem:[%s3 + $0xd0] sm:$0xff]
    %v642 = vld [vmem:[%s3 + $0xd8] sm:$0xff]
    %v643 = vld [vmem:[%s3 + $0xe0] sm:$0xff]
    %v644 = vld [vmem:[%s3 + $0xe8] sm:$0xff]
    %v645 = vld [vmem:[%s3 + $0xf0] sm:$0xff]
    %v646 = vld [vmem:[%s3 + $0xf8] sm:$0xff]
    %v647 = vld [vmem:[%s3 + $0x100] sm:$0xff]
    %v648 = vld [vmem:[%s3 + $0x108] sm:$0xff]
    %v649 = vld [vmem:[%s3 + $0x110] sm:$0xff]
    %v650 = vld [vmem:[%s3 + $0x118] sm:$0xff]
    %v651 = vld [vmem:[%s3 + $0x120] sm:$0xff]
    %v652 = vld [vmem:[%s3 + $0x128] sm:$0xff]
    %v653 = vld [vmem:[%s3 + $0x130] sm:$0xff]
    %v654 = vld [vmem:[%s3 + $0x138] sm:$0xff]
    %v655 = vld [vmem:[%s3 + $0x140] sm:$0xff]
    %v656 = vld [vmem:[%s3 + $0x148] sm:$0xff]
    %v657 = vld [vmem:[%s3 + $0x150] sm:$0xff]
    %v658 = vld [vmem:[%s3 + $0x158] sm:$0xff]
    %v659 = vld [vmem:[%s3 + $0x160] sm:$0xff]
    %v660 = vld [vmem:[%s3 + $0x168] sm:$0xff]
    %v661 = vld [vmem:[%s3 + $0x170] sm:$0xff]
    %v662 = vld [vmem:[%s3 + $0x178] sm:$0xff]
    %v663 = vld [vmem:[%s3 + $0x180] sm:$0xff]
    %v664 = vld [vmem:[%s3 + $0x188] sm:$0xff]
    %v665 = vld [vmem:[%s3 + $0x190] sm:$0xff]
    %v666 = vld [vmem:[%s3 + $0x198] sm:$0xff]
    %v667 = vld [vmem:[%s3 + $0x1a0] sm:$0xff]
    %v668 = vld [vmem:[%s3 + $0x1a8] sm:$0xff]
    %v669 = vld [vmem:[%s3 + $0x1b0] sm:$0xff]
    %v670 = vld [vmem:[%s3 + $0x1b8] sm:$0xff]
    %v671 = vld [vmem:[%s3 + $0x1c0] sm:$0xff]
    %v672 = vld [vmem:[%s3 + $0x1c8] sm:$0xff]
    %v673 = vld [vmem:[%s3 + $0x1d0] sm:$0xff]
    %v674 = vld [vmem:[%s3 + $0x1d8] sm:$0xff]
    %v675 = vld [vmem:[%s3 + $0x1e0] sm:$0xff]
    %v676 = vld [vmem:[%s3 + $0x1e8] sm:$0xff]
    %v677 = vld [vmem:[%s3 + $0x1f0] sm:$0xff]
    %v678 = vld [vmem:[%s3 + $0x1f8] sm:$0xff]
    %v679 = vld [vmem:[%s4] sm:$0xff]
    %v680 = vld [vmem:[%s4 + $0x8] sm:$0xff]
    %v681 = vld [vmem:[%s4 + $0x10] sm:$0xff]
    %v682 = vld [vmem:[%s4 + $0x18] sm:$0xff]
    %v683 = vld [vmem:[%s4 + $0x20] sm:$0xff]
    %v684 = vld [vmem:[%s4 + $0x28] sm:$0xff]
    %v685 = vld [vmem:[%s4 + $0x30] sm:$0xff]
    %v686 = vld [vmem:[%s4 + $0x38] sm:$0xff]
    %v687 = vld [vmem:[%s4 + $0x40] sm:$0xff]
    %v688 = vld [vmem:[%s4 + $0x48] sm:$0xff]
    %v689 = vld [vmem:[%s4 + $0x50] sm:$0xff]
    %v690 = vld [vmem:[%s4 + $0x58] sm:$0xff]
    %v691 = vld [vmem:[%s4 + $0x60] sm:$0xff]
    %v692 = vld [vmem:[%s4 + $0x68] sm:$0xff]
    %v693 = vld [vmem:[%s4 + $0x70] sm:$0xff]
    %v694 = vld [vmem:[%s4 + $0x78] sm:$0xff]
    %v695 = vld [vmem:[%s4 + $0x80] sm:$0xff]
    %v696 = vld [vmem:[%s4 + $0x88] sm:$0xff]
    %v697 = vld [vmem:[%s4 + $0x90] sm:$0xff]
    %v698 = vld [vmem:[%s4 + $0x98] sm:$0xff]
    %v699 = vld [vmem:[%s4 + $0xa0] sm:$0xff]
    %v700 = vld [vmem:[%s4 + $0xa8] sm:$0xff]
    %v701 = vld [vmem:[%s4 + $0xb0] sm:$0xff]
    %v702 = vld [vmem:[%s4 + $0xb8] sm:$0xff]
    %v703 = vld [vmem:[%s4 + $0xc0] sm:$0xff]
    %v704 = vld [vmem:[%s4 + $0xc8] sm:$0xff]
    %v705 = vld [vmem:[%s4 + $0xd0] sm:$0xff]
    %v706 = vld [vmem:[%s4 + $0xd8] sm:$0xff]
    %v707 = vld [vmem:[%s4 + $0xe0] sm:$0xff]
    %v708 = vld [vmem:[%s4 + $0xe8] sm:$0xff]
    %v709 = vld [vmem:[%s4 + $0xf0] sm:$0xff]
    %v710 = vld [vmem:[%s4 + $0xf8] sm:$0xff]
    %712 = vset.pattern.permute.xlu0 0
    %713 = vperm.xlu0 %712, %v679
    %v714 = vpop.permute.xlu0 %713
    %717 = vset.pattern.permute.xlu0 0
    %718 = vperm.xlu0 %717, %v680
    %v719 = vpop.permute.xlu0 %718
    %722 = vset.pattern.permute.xlu0 0
    %723 = vperm.xlu0 %722, %v681
    %v724 = vpop.permute.xlu0 %723
    %727 = vset.pattern.permute.xlu0 0
    %728 = vperm.xlu0 %727, %v682
    %v729 = vpop.permute.xlu0 %728
    %732 = vset.pattern.permute.xlu0 0
    %733 = vperm.xlu0 %732, %v683
    %v734 = vpop.permute.xlu0 %733
    %737 = vset.pattern.permute.xlu0 0
    %738 = vperm.xlu0 %737, %v684
    %v739 = vpop.permute.xlu0 %738
    %742 = vset.pattern.permute.xlu0 0
    %743 = vperm.xlu0 %742, %v685
    %v744 = vpop.permute.xlu0 %743
    %747 = vset.pattern.permute.xlu0 0
    %748 = vperm.xlu0 %747, %v686
    %v749 = vpop.permute.xlu0 %748
    %752 = vset.pattern.permute.xlu0 0
    %753 = vperm.xlu0 %752, %v687
    %v754 = vpop.permute.xlu0 %753
    %757 = vset.pattern.permute.xlu0 0
    %758 = vperm.xlu0 %757, %v688
    %v759 = vpop.permute.xlu0 %758
    %762 = vset.pattern.permute.xlu0 0
    %763 = vperm.xlu0 %762, %v689
    %v764 = vpop.permute.xlu0 %763
    %767 = vset.pattern.permute.xlu0 0
    %768 = vperm.xlu0 %767, %v690
    %v769 = vpop.permute.xlu0 %768
    %772 = vset.pattern.permute.xlu0 0
    %773 = vperm.xlu0 %772, %v691
    %v774 = vpop.permute.xlu0 %773
    %777 = vset.pattern.permute.xlu0 0
    %778 = vperm.xlu0 %777, %v692
    %v779 = vpop.permute.xlu0 %778
    %782 = vset.pattern.permute.xlu0 0
    %783 = vperm.xlu0 %782, %v693
    %v784 = vpop.permute.xlu0 %783
    %787 = vset.pattern.permute.xlu0 0
    %788 = vperm.xlu0 %787, %v694
    %v789 = vpop.permute.xlu0 %788
    %792 = vset.pattern.permute.xlu0 0
    %793 = vperm.xlu0 %792, %v695
    %v794 = vpop.permute.xlu0 %793
    %797 = vset.pattern.permute.xlu0 0
    %798 = vperm.xlu0 %797, %v696
    %v799 = vpop.permute.xlu0 %798
    %802 = vset.pattern.permute.xlu0 0
    %803 = vperm.xlu0 %802, %v697
    %v804 = vpop.permute.xlu0 %803
    %807 = vset.pattern.permute.xlu0 0
    %808 = vperm.xlu0 %807, %v698
    %v809 = vpop.permute.xlu0 %808
    %812 = vset.pattern.permute.xlu0 0
    %813 = vperm.xlu0 %812, %v699
    %v814 = vpop.permute.xlu0 %813
    %817 = vset.pattern.permute.xlu0 0
    %818 = vperm.xlu0 %817, %v700
    %v819 = vpop.permute.xlu0 %818
    %822 = vset.pattern.permute.xlu0 0
    %823 = vperm.xlu0 %822, %v701
    %v824 = vpop.permute.xlu0 %823
    %827 = vset.pattern.permute.xlu0 0
    %828 = vperm.xlu0 %827, %v702
    %v829 = vpop.permute.xlu0 %828
    %832 = vset.pattern.permute.xlu0 0
    %833 = vperm.xlu0 %832, %v703
    %v834 = vpop.permute.xlu0 %833
    %837 = vset.pattern.permute.xlu0 0
    %838 = vperm.xlu0 %837, %v704
    %v839 = vpop.permute.xlu0 %838
    %842 = vset.pattern.permute.xlu0 0
    %843 = vperm.xlu0 %842, %v705
    %v844 = vpop.permute.xlu0 %843
    %847 = vset.pattern.permute.xlu0 0
    %848 = vperm.xlu0 %847, %v706
    %v849 = vpop.permute.xlu0 %848
    %852 = vset.pattern.permute.xlu0 0
    %853 = vperm.xlu0 %852, %v707
    %v854 = vpop.permute.xlu0 %853
    %857 = vset.pattern.permute.xlu0 0
    %858 = vperm.xlu0 %857, %v708
    %v859 = vpop.permute.xlu0 %858
    %862 = vset.pattern.permute.xlu0 0
    %863 = vperm.xlu0 %862, %v709
    %v864 = vpop.permute.xlu0 %863
    %867 = vset.pattern.permute.xlu0 0
    %868 = vperm.xlu0 %867, %v710
    %v869 = vpop.permute.xlu0 %868
    %871 = vmatprep.subr.mxu0 0.0
    %872 = vmatpush1.msra.mxu0 %v583
    %873 = vmatprep.subr.mxu0 0.0
    %874 = vmatpush1.msra.mxu0 %v584
    %875 = vmatprep.subr.mxu0 0.0
    %876 = vmatpush1.msra.mxu0 %v585
    %877 = vmatprep.subr.mxu0 0.0
    %878 = vmatpush1.msra.mxu0 %v586
    %879 = vmatprep.subr.mxu0 0.0
    %880 = vmatpush1.msra.mxu0 %v587
    %881 = vmatprep.subr.mxu0 0.0
    %882 = vmatpush1.msra.mxu0 %v588
    %883 = vmatprep.subr.mxu0 0.0
    %884 = vmatpush1.msra.mxu0 %v589
    %885 = vmatprep.subr.mxu0 0.0
    %886 = vmatpush1.msra.mxu0 %v590
    %887 = vmatprep.subr.mxu0 0.0
    %888 = vmatpush1.msra.mxu0 %v591
    %889 = vmatprep.subr.mxu0 0.0
    %890 = vmatpush1.msra.mxu0 %v592
    %891 = vmatprep.subr.mxu0 0.0
    %892 = vmatpush1.msra.mxu0 %v593
    %893 = vmatprep.subr.mxu0 0.0
    %894 = vmatpush1.msra.mxu0 %v594
    %895 = vmatprep.subr.mxu0 0.0
    %896 = vmatpush1.msra.mxu0 %v595
    %897 = vmatprep.subr.mxu0 0.0
    %898 = vmatpush1.msra.mxu0 %v596
    %899 = vmatprep.subr.mxu0 0.0
    %900 = vmatpush1.msra.mxu0 %v597
    %901 = vmatprep.subr.mxu0 0.0
    %902 = vmatpush1.msra.mxu0 %v598
    %903 = vmatprep.subr.mxu0 0.0
    %904 = vmatpush1.msra.mxu0 %v599
    %905 = vmatprep.subr.mxu0 0.0
    %906 = vmatpush1.msra.mxu0 %v600
    %907 = vmatprep.subr.mxu0 0.0
    %908 = vmatpush1.msra.mxu0 %v601
    %909 = vmatprep.subr.mxu0 0.0
    %910 = vmatpush1.msra.mxu0 %v602
    %911 = vmatprep.subr.mxu0 0.0
    %912 = vmatpush1.msra.mxu0 %v603
    %913 = vmatprep.subr.mxu0 0.0
    %914 = vmatpush1.msra.mxu0 %v604
    %915 = vmatprep.subr.mxu0 0.0
    %916 = vmatpush1.msra.mxu0 %v605
    %917 = vmatprep.subr.mxu0 0.0
    %918 = vmatpush1.msra.mxu0 %v606
    %919 = vmatprep.subr.mxu0 0.0
    %920 = vmatpush1.msra.mxu0 %v607
    %921 = vmatprep.subr.mxu0 0.0
    %922 = vmatpush1.msra.mxu0 %v608
    %923 = vmatprep.subr.mxu0 0.0
    %924 = vmatpush1.msra.mxu0 %v609
    %925 = vmatprep.subr.mxu0 0.0
    %926 = vmatpush1.msra.mxu0 %v610
    %927 = vmatprep.subr.mxu0 0.0
    %928 = vmatpush1.msra.mxu0 %v611
    %929 = vmatprep.subr.mxu0 0.0
    %930 = vmatpush1.msra.mxu0 %v612
    %931 = vmatprep.subr.mxu0 0.0
    %932 = vmatpush1.msra.mxu0 %v613
    %933 = vmatprep.subr.mxu0 0.0
    %934 = vmatpush1.msra.mxu0 %v614
    %935 = vmatprep.mubr.f32.mxu0 %v616
    %936 = vmatmul.mubr.f32.gmra.mrb[0].mxu0 %v615
    %v937 = vpop.f32.mrb[0].mxu0
    %v938 = vadd.f32 %v714, %v937
    %v939 = vpop.f32.mrb[0].mxu0
    %940 = vmatprep.mubr.f32.mxu0 %v618
    %941 = vmatmul.mubr.f32.gmra.mrb[0].mxu0 %v617
    %v942 = vpop.f32.mrb[0].mxu0
    %v943 = vadd.f32 %v719, %v942
    %v944 = vpop.f32.mrb[0].mxu0
    %945 = vmatprep.mubr.f32.mxu0 %v620
    %946 = vmatmul.mubr.f32.gmra.mrb[0].mxu0 %v619
    %v947 = vpop.f32.mrb[0].mxu0
    %v948 = vadd.f32 %v724, %v947
    %v949 = vpop.f32.mrb[0].mxu0
    %950 = vmatprep.mubr.f32.mxu0 %v622
    %951 = vmatmul.mubr.f32.gmra.mrb[0].mxu0 %v621
    %v952 = vpop.f32.mrb[0].mxu0
    %v953 = vadd.f32 %v729, %v952
    %v954 = vpop.f32.mrb[0].mxu0
    %955 = vmatprep.mubr.f32.mxu0 %v624
    %956 = vmatmul.mubr.f32.gmra.mrb[0].mxu0 %v623
    %v957 = vpop.f32.mrb[0].mxu0
    %v958 = vadd.f32 %v734, %v957
    %v959 = vpop.f32.mrb[0].mxu0
    %960 = vmatprep.mubr.f32.mxu0 %v626
    %961 = vmatmul.mubr.f32.gmra.mrb[0].mxu0 %v625
    %v962 = vpop.f32.mrb[0].mxu0
    %v963 = vadd.f32 %v739, %v962
    %v964 = vpop.f32.mrb[0].mxu0
    %965 = vmatprep.mubr.f32.mxu0 %v628
    %966 = vmatmul.mubr.f32.gmra.mrb[0].mxu0 %v627
    %v967 = vpop.f32.mrb[0].mxu0
    %v968 = vadd.f32 %v744, %v967
    %v969 = vpop.f32.mrb[0].mxu0
    %970 = vmatprep.mubr.f32.mxu0 %v630
    %971 = vmatmul.mubr.f32.gmra.mrb[0].mxu0 %v629
    %v972 = vpop.f32.mrb[0].mxu0
    %v973 = vadd.f32 %v749, %v972
    %v974 = vpop.f32.mrb[0].mxu0
    %975 = vmatprep.mubr.f32.mxu0 %v632
    %976 = vmatmul.mubr.f32.gmra.mrb[0].mxu0 %v631
    %v977 = vpop.f32.mrb[0].mxu0
    %v978 = vadd.f32 %v754, %v977
    %v979 = vpop.f32.mrb[0].mxu0
    %980 = vmatprep.mubr.f32.mxu0 %v634
    %981 = vmatmul.mubr.f32.gmra.mrb[0].mxu0 %v633
    %v982 = vpop.f32.mrb[0].mxu0
    %v983 = vadd.f32 %v759, %v982
    %v984 = vpop.f32.mrb[0].mxu0
    %985 = vmatprep.mubr.f32.mxu0 %v636
    %986 = vmatmul.mubr.f32.gmra.mrb[0].mxu0 %v635
    %v987 = vpop.f32.mrb[0].mxu0
    %v988 = vadd.f32 %v764, %v987
    %v989 = vpop.f32.mrb[0].mxu0
    %990 = vmatprep.mubr.f32.mxu0 %v638
    %991 = vmatmul.mubr.f32.gmra.mrb[0].mxu0 %v637
    %v992 = vpop.f32.mrb[0].mxu0
    %v993 = vadd.f32 %v769, %v992
    %v994 = vpop.f32.mrb[0].mxu0
    %995 = vmatprep.mubr.f32.mxu0 %v640
    %996 = vmatmul.mubr.f32.gmra.mrb[0].mxu0 %v639
    %v997 = vpop.f32.mrb[0].mxu0
    %v998 = vadd.f32 %v774, %v997
    %v999 = vpop.f32.mrb[0].mxu0
    %1000 = vmatprep.mubr.f32.mxu0 %v642
    %1001 = vmatmul.mubr.f32.gmra.mrb[0].mxu0 %v641
    %v1002 = vpop.f32.mrb[0].mxu0
    %v1003 = vadd.f32 %v779, %v1002
    %v1004 = vpop.f32.mrb[0].mxu0
    %1005 = vmatprep.mubr.f32.mxu0 %v644
    %1006 = vmatmul.mubr.f32.gmra.mrb[0].mxu0 %v643
    %v1007 = vpop.f32.mrb[0].mxu0
    %v1008 = vadd.f32 %v784, %v1007
    %v1009 = vpop.f32.mrb[0].mxu0
    %1010 = vmatprep.mubr.f32.mxu0 %v646
    %1011 = vmatmul.mubr.f32.gmra.mrb[0].mxu0 %v645
    %v1012 = vpop.f32.mrb[0].mxu0
    %v1013 = vadd.f32 %v789, %v1012
    %v1014 = vpop.f32.mrb[0].mxu0
    %1015 = vmatprep.mubr.f32.mxu0 %v648
    %1016 = vmatmul.mubr.f32.gmra.mrb[0].mxu0 %v647
    %v1017 = vpop.f32.mrb[0].mxu0
    %v1018 = vadd.f32 %v794, %v1017
    %v1019 = vpop.f32.mrb[0].mxu0
    %1020 = vmatprep.mubr.f32.mxu0 %v650
    %1021 = vmatmul.mubr.f32.gmra.mrb[0].mxu0 %v649
    %v1022 = vpop.f32.mrb[0].mxu0
    %v1023 = vadd.f32 %v799, %v1022
    %v1024 = vpop.f32.mrb[0].mxu0
    %1025 = vmatprep.mubr.f32.mxu0 %v652
    %1026 = vmatmul.mubr.f32.gmra.mrb[0].mxu0 %v651
    %v1027 = vpop.f32.mrb[0].mxu0
    %v1028 = vadd.f32 %v804, %v1027
    %v1029 = vpop.f32.mrb[0].mxu0
    %1030 = vmatprep.mubr.f32.mxu0 %v654
    %1031 = vmatmul.mubr.f32.gmra.mrb[0].mxu0 %v653
    %v1032 = vpop.f32.mrb[0].mxu0
    %v1033 = vadd.f32 %v809, %v1032
    %v1034 = vpop.f32.mrb[0].mxu0
    %1035 = vmatprep.mubr.f32.mxu0 %v656
    %1036 = vmatmul.mubr.f32.gmra.mrb[0].mxu0 %v655
    %v1037 = vpop.f32.mrb[0].mxu0
    %v1038 = vadd.f32 %v814, %v1037
    %v1039 = vpop.f32.mrb[0].mxu0
    %1040 = vmatprep.mubr.f32.mxu0 %v658
    %1041 = vmatmul.mubr.f32.gmra.mrb[0].mxu0 %v657
    %v1042 = vpop.f32.mrb[0].mxu0
    %v1043 = vadd.f32 %v819, %v1042
    %v1044 = vpop.f32.mrb[0].mxu0
    %1045 = vmatprep.mubr.f32.mxu0 %v660
    %1046 = vmatmul.mubr.f32.gmra.mrb[0].mxu0 %v659
    %v1047 = vpop.f32.mrb[0].mxu0
    %v1048 = vadd.f32 %v824, %v1047
    %v1049 = vpop.f32.mrb[0].mxu0
    %1050 = vmatprep.mubr.f32.mxu0 %v662
    %1051 = vmatmul.mubr.f32.gmra.mrb[0].mxu0 %v661
    %v1052 = vpop.f32.mrb[0].mxu0
    %v1053 = vadd.f32 %v829, %v1052
    %v1054 = vpop.f32.mrb[0].mxu0
    %1055 = vmatprep.mubr.f32.mxu0 %v664
    %1056 = vmatmul.mubr.f32.gmra.mrb[0].mxu0 %v663
    %v1057 = vpop.f32.mrb[0].mxu0
    %v1058 = vadd.f32 %v834, %v1057
    %v1059 = vpop.f32.mrb[0].mxu0
    %1060 = vmatprep.mubr.f32.mxu0 %v666
    %1061 = vmatmul.mubr.f32.gmra.mrb[0].mxu0 %v665
    %v1062 = vpop.f32.mrb[0].mxu0
    %v1063 = vadd.f32 %v839, %v1062
    %v1064 = vpop.f32.mrb[0].mxu0
    %1065 = vmatprep.mubr.f32.mxu0 %v668
    %1066 = vmatmul.mubr.f32.gmra.mrb[0].mxu0 %v667
    %v1067 = vpop.f32.mrb[0].mxu0
    %v1068 = vadd.f32 %v844, %v1067
    %v1069 = vpop.f32.mrb[0].mxu0
    %1070 = vmatprep.mubr.f32.mxu0 %v670
    %1071 = vmatmul.mubr.f32.gmra.mrb[0].mxu0 %v669
    %v1072 = vpop.f32.mrb[0].mxu0
    %v1073 = vadd.f32 %v849, %v1072
    %v1074 = vpop.f32.mrb[0].mxu0
    %1075 = vmatprep.mubr.f32.mxu0 %v672
    %1076 = vmatmul.mubr.f32.gmra.mrb[0].mxu0 %v671
    %v1077 = vpop.f32.mrb[0].mxu0
    %v1078 = vadd.f32 %v854, %v1077
    %v1079 = vpop.f32.mrb[0].mxu0
    %1080 = vmatprep.mubr.f32.mxu0 %v674
    %1081 = vmatmul.mubr.f32.gmra.mrb[0].mxu0 %v673
    %v1082 = vpop.f32.mrb[0].mxu0
    %v1083 = vadd.f32 %v859, %v1082
    %v1084 = vpop.f32.mrb[0].mxu0
    %1085 = vmatprep.mubr.f32.mxu0 %v676
    %1086 = vmatmul.mubr.f32.gmra.mrb[0].mxu0 %v675
    %v1087 = vpop.f32.mrb[0].mxu0
    %v1088 = vadd.f32 %v864, %v1087
    %v1089 = vpop.f32.mrb[0].mxu0
    %1090 = vmatprep.mubr.f32.mxu0 %v678
    %1091 = vmatmul.mubr.f32.gmra.mrb[0].mxu0 %v677
    %v1092 = vpop.f32.mrb[0].mxu0
    %v1093 = vadd.f32 %v869, %v1092
    %v1094 = vpop.f32.mrb[0].mxu0
    %1095 = vdwg.mxu0
    %v1096 = vmax.f32 %v938, 0.0
    %v1097 = vmax.f32 %v943, 0.0
    %v1098 = vmax.f32 %v948, 0.0
    %v1099 = vmax.f32 %v953, 0.0
    %v1100 = vmax.f32 %v958, 0.0
    %v1101 = vmax.f32 %v963, 0.0
    %v1102 = vmax.f32 %v968, 0.0
    %v1103 = vmax.f32 %v973, 0.0
    %v1104 = vmax.f32 %v978, 0.0
    %v1105 = vmax.f32 %v983, 0.0
    %v1106 = vmax.f32 %v988, 0.0
    %v1107 = vmax.f32 %v993, 0.0
    %v1108 = vmax.f32 %v998, 0.0
    %v1109 = vmax.f32 %v1003, 0.0
    %v1110 = vmax.f32 %v1008, 0.0
    %v1111 = vmax.f32 %v1013, 0.0
    %v1112 = vmax.f32 %v1018, 0.0
    %v1113 = vmax.f32 %v1023, 0.0
    %v1114 = vmax.f32 %v1028, 0.0
    %v1115 = vmax.f32 %v1033, 0.0
    %v1116 = vmax.f32 %v1038, 0.0
    %v1117 = vmax.f32 %v1043, 0.0
    %v1118 = vmax.f32 %v1048, 0.0
    %v1119 = vmax.f32 %v1053, 0.0
    %v1120 = vmax.f32 %v1058, 0.0
    %v1121 = vmax.f32 %v1063, 0.0
    %v1122 = vmax.f32 %v1068, 0.0
    %v1123 = vmax.f32 %v1073, 0.0
    %v1124 = vmax.f32 %v1078, 0.0
    %v1125 = vmax.f32 %v1083, 0.0
    %v1126 = vmax.f32 %v1088, 0.0
    %v1127 = vmax.f32 %v1093, 0.0
    %v1128 = vld [vmem:[%s5] sm:$0x3]
    %v1129 = vld [vmem:[#allocation2] sm:$0x1]
    %1131 = vset.pattern.permute.xlu0 0
    %1132 = vperm.xlu0 %1131, %v1129
    %v1133 = vpop.permute.xlu0 %1132
    %v1135 = vlaneseq
    %v1136 = vshrl.u32 %v1135, 7
    %v1137 = vsub.s32 0, %v1136
    %v1138 = vrot.slane %v1133, %v1137
    %v1140 = vlaneseq
    %v1141 = vshrl.u32 %v1140, 7
    %v1142 = vsub.s32 0, %v1141
    %v1143 = vrot.slane %v1128, %v1142
    %v1144 = vlaneseq
    %v1145 = vshrl.u32 %v1144, 7
    %v1146 = vsub.s32 1, %v1145
    %v1147 = vrot.slane %v1128, %v1146
    %1150 = vmatprep.subr.mxu0 0.0
    %1151 = vmatpush1.msra.mxu0 %v1096
    %1152 = vmatprep.subr.mxu0 0.0
    %1153 = vmatpush1.msra.mxu0 %v1097
    %1154 = vmatprep.subr.mxu0 0.0
    %1155 = vmatpush1.msra.mxu0 %v1098
    %1156 = vmatprep.subr.mxu0 0.0
    %1157 = vmatpush1.msra.mxu0 %v1099
    %1158 = vmatprep.subr.mxu0 0.0
    %1159 = vmatpush1.msra.mxu0 %v1100
    %1160 = vmatprep.subr.mxu0 0.0
    %1161 = vmatpush1.msra.mxu0 %v1101
    %1162 = vmatprep.subr.mxu0 0.0
    %1163 = vmatpush1.msra.mxu0 %v1102
    %1164 = vmatprep.subr.mxu0 0.0
    %1165 = vmatpush1.msra.mxu0 %v1103
    %1166 = vmatprep.subr.mxu0 0.0
    %1167 = vmatpush1.msra.mxu0 %v1104
    %1168 = vmatprep.subr.mxu0 0.0
    %1169 = vmatpush1.msra.mxu0 %v1105
    %1170 = vmatprep.subr.mxu0 0.0
    %1171 = vmatpush1.msra.mxu0 %v1106
    %1172 = vmatprep.subr.mxu0 0.0
    %1173 = vmatpush1.msra.mxu0 %v1107
    %1174 = vmatprep.subr.mxu0 0.0
    %1175 = vmatpush1.msra.mxu0 %v1108
    %1176 = vmatprep.subr.mxu0 0.0
    %1177 = vmatpush1.msra.mxu0 %v1109
    %1178 = vmatprep.subr.mxu0 0.0
    %1179 = vmatpush1.msra.mxu0 %v1110
    %1180 = vmatprep.subr.mxu0 0.0
    %1181 = vmatpush1.msra.mxu0 %v1111
    %1182 = vmatprep.subr.mxu0 0.0
    %1183 = vmatpush1.msra.mxu0 %v1112
    %1184 = vmatprep.subr.mxu0 0.0
    %1185 = vmatpush1.msra.mxu0 %v1113
    %1186 = vmatprep.subr.mxu0 0.0
    %1187 = vmatpush1.msra.mxu0 %v1114
    %1188 = vmatprep.subr.mxu0 0.0
    %1189 = vmatpush1.msra.mxu0 %v1115
    %1190 = vmatprep.subr.mxu0 0.0
    %1191 = vmatpush1.msra.mxu0 %v1116
    %1192 = vmatprep.subr.mxu0 0.0
    %1193 = vmatpush1.msra.mxu0 %v1117
    %1194 = vmatprep.subr.mxu0 0.0
    %1195 = vmatpush1.msra.mxu0 %v1118
    %1196 = vmatprep.subr.mxu0 0.0
    %1197 = vmatpush1.msra.mxu0 %v1119
    %1198 = vmatprep.subr.mxu0 0.0
    %1199 = vmatpush1.msra.mxu0 %v1120
    %1200 = vmatprep.subr.mxu0 0.0
    %1201 = vmatpush1.msra.mxu0 %v1121
    %1202 = vmatprep.subr.mxu0 0.0
    %1203 = vmatpush1.msra.mxu0 %v1122
    %1204 = vmatprep.subr.mxu0 0.0
    %1205 = vmatpush1.msra.mxu0 %v1123
    %1206 = vmatprep.subr.mxu0 0.0
    %1207 = vmatpush1.msra.mxu0 %v1124
    %1208 = vmatprep.subr.mxu0 0.0
    %1209 = vmatpush1.msra.mxu0 %v1125
    %1210 = vmatprep.subr.mxu0 0.0
    %1211 = vmatpush1.msra.mxu0 %v1126
    %1212 = vmatprep.subr.mxu0 0.0
    %1213 = vmatpush1.msra.mxu0 %v1127
    %1214 = vmatprep.mubr.f32.mxu0 %v1147
    %1215 = vmatmul.mubr.f32.gmra.mrb[0].mxu0 %v1143
    %v1216 = vpop.f32.mrb[0].mxu0
    %v1217 = vadd.f32 %v1138, %v1216
    %v1218 = vpop.f32.mrb[0].mxu0
    %1219 = vdwg.mxu0
    %vm1220 = vcmask 122880
    %1221 = vst.msk [vmem:[#allocation3] sm:$0x1] %vm1220, %v1217
    // Predicated region
    $region30: #{critic_forward.1} parent=1 // pred_check
      _
    $region31: #{critic_forward.1} parent=1 // pred_check_branch
      %1223 = sbr.rel (0) target = $region33
    $region32: #{critic_forward.1} parent=1 // pred_region
      %s1225 = ssub.s32 16, 16
      %1226 = vsyncadd [#allocation4], %s1225
      %s1228 = sshll.u32 [#allocation3], 4
      %s1229 = int_to_ptr.vmem [resolvable:$true] %s1228
      %1231 = dma.vmem_to_hbm [thread:$0]  %s1229, 16, %s7, [#allocation4]
    $region33: #{critic_forward.1} parent=1 // pred_fallthru
      _
    // Predicated region
    $region34: #{critic_forward.1} parent=1 // pred_check
      _
    $region35: #{critic_forward.1} parent=1 // pred_check_branch
      %1233 = sbr.rel (0) target = $region37
    $region36: #{critic_forward.1} parent=1 // pred_region
      %1234 = dma.done [#allocation4], 16
    $region37: #{critic_forward.1} parent=1 // pred_fallthru
      _
    %1235 = vsyncpa [#allocation4], 1

</llo_original>
